<compile_context>
chip_gen: v7x
topology: tpu7x:2x2x1
jax: 0.10.0
libtpu: 0.0.40
codegen_flags: <defaults>
</compile_context>

<pallas_src>
import jax
import jax.numpy as jnp
from jax.experimental import pallas as pl
from jax.experimental.pallas import tpu as pltpu

SAMPLE_NUM = 50
HIDDEN = 128


def _round_up(n, m):
    return ((n + m - 1) // m) * m


def _disc_kernel(x_ref, w1_ref, b1_ref, w2_ref, b2_ref, o_ref):
    # fc1 on the MXU: bf16 operands, f32 accumulation.
    h = jnp.dot(x_ref[...], w1_ref[...], preferred_element_type=jnp.float32)
    # bias + ReLU in f32 on the VPU (b1 block is VMEM-resident).
    h = jnp.maximum(h + b1_ref[...], 0.0)
    # fc2 also on the MXU (N=1): MXU has slack at K=50; avoids the XLU
    # 128-lane cross-lane reduce that was the saturated slot before.
    y = jnp.dot(h.astype(jnp.bfloat16), w2_ref[...],
                preferred_element_type=jnp.float32)
    y = y + b2_ref[0, 0]                                   # scalar bias from SMEM
    # sigmoid via EUP tanh (stable form of 1/(1+exp(-y))), f32 epilogue.
    o_ref[...] = (0.5 * jnp.tanh(0.5 * y) + 0.5).astype(o_ref.dtype)


def discriminator_forward(x, w1, b1, w2, b2, *, block_b=4096):
    """x: (B, SAMPLE_NUM); w1: (SAMPLE_NUM, 128); b1: (1, 128) or (128,);
    w2: (128, 1); b2: (1, 1) or (1,).
    Returns sigmoid(relu(x @ w1 + b1) @ w2 + b2) as (B, 1) float32."""
    B = x.shape[0]
    assert x.shape[1] == SAMPLE_NUM

    # bf16 activation/weight traffic for the matmuls; f32 elementwise epilogue.
    if x.dtype != jnp.bfloat16:
        x = x.astype(jnp.bfloat16)
    w1 = w1.astype(jnp.bfloat16)
    b1 = b1.reshape(1, HIDDEN).astype(jnp.float32)
    w2 = w2.reshape(HIDDEN, 1).astype(jnp.bfloat16)
    b2 = b2.reshape(1, 1).astype(jnp.float32)

    # Batch tiling:
    #  * small B: one tiny tile (sublane-aligned).
    #  * large B: tiles that are a multiple of 512 (DMA/step-overhead efficient),
    #    capped so the grid has >=2 steps -> both v7x TensorCores get work.
    if B <= 512:
        bm = _round_up(max(B, 8), 8)
    else:
        bm = min(_round_up(block_b, 512), _round_up(pl.cdiv(B, 2), 512))
    b_pad = _round_up(B, bm)
    if b_pad != B:
        x = jnp.pad(x, ((0, b_pad - B), (0, 0)))
    grid = (b_pad // bm,)

    cost = pl.CostEstimate(
        flops=int(2 * b_pad * HIDDEN * (SAMPLE_NUM + 1)),
        transcendentals=int(b_pad),
        bytes_accessed=int(
            b_pad * SAMPLE_NUM * 2          # x (bf16)
            + SAMPLE_NUM * HIDDEN * 2       # w1 (bf16)
            + HIDDEN * 4 + HIDDEN * 2 + 4   # b1 (f32), w2 (bf16), b2
            + b_pad * 4                     # output (f32)
        ),
    )

    out = pl.pallas_call(
        _disc_kernel,
        out_shape=jax.ShapeDtypeStruct((b_pad, 1), jnp.float32),
        grid=grid,
        in_specs=[
            pl.BlockSpec((bm, SAMPLE_NUM), lambda i: (i, 0)),       # x tile (pipelined)
            pl.BlockSpec((SAMPLE_NUM, HIDDEN), lambda i: (0, 0)),   # w1 resident
            pl.BlockSpec((1, HIDDEN), lambda i: (0, 0)),            # b1 resident
            pl.BlockSpec((HIDDEN, 1), lambda i: (0, 0)),            # w2 resident (bf16)
            pl.BlockSpec(memory_space=pltpu.MemorySpace.SMEM),      # b2 scalar
        ],
        out_specs=pl.BlockSpec((bm, 1), lambda i: (i, 0)),
        compiler_params=pltpu.CompilerParams(
            dimension_semantics=("parallel",),
            vmem_limit_bytes=48 << 20,      # room for x double-buffer + f32 h temp
        ),
        cost_estimate=cost,
    )(x, w1, b1, w2, b2)

    return out[:B]


def init_params(key):
    """Deterministic init mimicking PyTorch nn.Linear default (uniform +/- 1/sqrt(fan_in))."""
    k1, k2, k3, k4 = jax.random.split(key, 4)
    bound1 = 1.0 / jnp.sqrt(SAMPLE_NUM)
    bound2 = 1.0 / jnp.sqrt(HIDDEN)
    w1 = jax.random.uniform(k1, (SAMPLE_NUM, HIDDEN), jnp.float32, -bound1, bound1)
    b1 = jax.random.uniform(k2, (1, HIDDEN), jnp.float32, -bound1, bound1)
    w2 = jax.random.uniform(k3, (HIDDEN, 1), jnp.float32, -bound2, bound2)
    b2 = jax.random.uniform(k4, (1, 1), jnp.float32, -bound2, bound2)
    return w1, b1, w2, b2


if __name__ == "__main__":
    key = jax.random.PRNGKey(0)
    kx, kp = jax.random.split(key)

    B = 2  # original script used batch=1 with the linspace sample
    x = jax.random.normal(kx, (B, SAMPLE_NUM), jnp.float32)
    w1, b1, w2, b2 = init_params(kp)

    out = discriminator_forward(x, w1, b1, w2, b2)
    out = jax.block_until_ready(out)
    assert out.shape == (B, 1)

    # Reference in plain JAX with the same bf16 rounding and f32 accumulation.
    xb = x.astype(jnp.bfloat16)
    w1b = w1.astype(jnp.bfloat16)
    h = jnp.maximum(jnp.dot(xb, w1b, preferred_element_type=jnp.float32) + b1, 0.0)
    y = jnp.dot(h.astype(jnp.bfloat16), w2.astype(jnp.bfloat16),
                preferred_element_type=jnp.float32) + b2
    ref = jax.nn.sigmoid(y)
    assert jnp.allclose(out, ref, atol=2e-3, rtol=2e-3)

    print("KERNEL_OK")
</pallas_src>

<mosaic_0001>
module attributes {stable_mosaic.version = 11 : i64} {
  func.func @_disc_kernel(%arg0: i32, %arg1: memref<8x50xbf16, #tpu.memory_space<vmem>>, %arg2: memref<50x128xbf16, #tpu.memory_space<vmem>>, %arg3: memref<1x128xf32, #tpu.memory_space<vmem>>, %arg4: memref<128x1xbf16, #tpu.memory_space<vmem>>, %arg5: memref<1x1xf32, #tpu.memory_space<smem>>, %arg6: memref<8x1xf32, #tpu.memory_space<vmem>>) attributes {dimension_semantics = [#tpu.dimension_semantics<parallel>], iteration_bounds = array<i64: 1>, scalar_prefetch = 0 : i64, scratch_operands = 0 : i64, tpu.core_type = #tpu.core_type<tc>, window_params = [{transform_indices = @transform_0, window_bounds = array<i64: 8, 50>}, {pipeline_mode = #tpu.pipeline_mode<synchronous>, transform_indices = @transform_1, window_bounds = array<i64: 50, 128>}, {pipeline_mode = #tpu.pipeline_mode<synchronous>, transform_indices = @transform_2, window_bounds = array<i64: 1, 128>}, {pipeline_mode = #tpu.pipeline_mode<synchronous>, transform_indices = @transform_3, window_bounds = array<i64: 128, 1>}, {transform_indices = @transform_4, window_bounds = array<i64: 1, 1>}, {transform_indices = @transform_5, window_bounds = array<i64: 8, 1>}]} {
    %c0 = arith.constant 0 : index
    %c0_0 = arith.constant 0 : index
    %0 = vector.load %arg1[%c0, %c0_0] : memref<8x50xbf16, #tpu.memory_space<vmem>>, vector<8x50xbf16>
    %c0_1 = arith.constant 0 : index
    %c0_2 = arith.constant 0 : index
    %1 = vector.load %arg2[%c0_1, %c0_2] : memref<50x128xbf16, #tpu.memory_space<vmem>>, vector<50x128xbf16>
    %cst = arith.constant dense<0.000000e+00> : vector<8x128xf32>
    %2 = tpu.matmul %0, %1, %cst {dimension_numbers = #tpu.dot_dimension_numbers<[1], [0], [0], [1], [0, 0, 1, 1], [], []>} : vector<8x50xbf16>, vector<50x128xbf16>, vector<8x128xf32> -> vector<8x128xf32>
    %c0_3 = arith.constant 0 : index
    %c0_4 = arith.constant 0 : index
    %3 = vector.load %arg3[%c0_3, %c0_4] : memref<1x128xf32, #tpu.memory_space<vmem>>, vector<1x128xf32>
    %4 = vector.broadcast %3 : vector<1x128xf32> to vector<8x128xf32>
    %5 = arith.addf %2, %4 : vector<8x128xf32>
    %cst_5 = arith.constant 0.000000e+00 : f32
    %6 = vector.broadcast %cst_5 : f32 to vector<8x128xf32>
    %7 = arith.maximumf %5, %6 : vector<8x128xf32>
    %8 = arith.truncf %7 : vector<8x128xf32> to vector<8x128xbf16>
    %c0_6 = arith.constant 0 : index
    %c0_7 = arith.constant 0 : index
    %9 = vector.load %arg4[%c0_6, %c0_7] : memref<128x1xbf16, #tpu.memory_space<vmem>>, vector<128x1xbf16>
    %cst_8 = arith.constant dense<0.000000e+00> : vector<8x1xf32>
    %10 = tpu.matmul %8, %9, %cst_8 {dimension_numbers = #tpu.dot_dimension_numbers<[1], [0], [0], [1], [0, 0, 1, 1], [], []>} : vector<8x128xbf16>, vector<128x1xbf16>, vector<8x1xf32> -> vector<8x1xf32>
    %c0_9 = arith.constant 0 : index
    %c0_10 = arith.constant 0 : index
    %11 = memref.load %arg5[%c0_9, %c0_10] : memref<1x1xf32, #tpu.memory_space<smem>>
    %12 = vector.broadcast %11 : f32 to vector<8x1xf32>
    %13 = arith.addf %10, %12 : vector<8x1xf32>
    %cst_11 = arith.constant 5.000000e-01 : f32
    %14 = vector.broadcast %cst_11 : f32 to vector<8x1xf32>
    %15 = arith.mulf %14, %13 : vector<8x1xf32>
    %16 = math.tanh %15 : vector<8x1xf32>
    %cst_12 = arith.constant 5.000000e-01 : f32
    %17 = vector.broadcast %cst_12 : f32 to vector<8x1xf32>
    %18 = arith.mulf %17, %16 : vector<8x1xf32>
    %cst_13 = arith.constant 5.000000e-01 : f32
    %19 = vector.broadcast %cst_13 : f32 to vector<8x1xf32>
    %20 = arith.addf %18, %19 : vector<8x1xf32>
    %c0_14 = arith.constant 0 : index
    %c0_15 = arith.constant 0 : index
    %21 = vector.load %arg6[%c0_14, %c0_15] : memref<8x1xf32, #tpu.memory_space<vmem>>, vector<8x1xf32>
    tpu.vector_store %arg6[%c0_14, %c0_15], %20 {strides = array<i32>} : memref<8x1xf32, #tpu.memory_space<vmem>>, vector<8x1xf32>,
    return
  }
  func.func @transform_0(%arg0: i32) -> (i32, i32) {
    %c0_i32 = arith.constant 0 : i32
    %c0_i32_0 = arith.constant 0 : i32
    return %arg0, %c0_i32 : i32, i32
  }
  func.func @transform_1(%arg0: i32) -> (i32, i32) {
    %c0_i32 = arith.constant 0 : i32
    %c0_i32_0 = arith.constant 0 : i32
    %c0_i32_1 = arith.constant 0 : i32
    return %c0_i32, %c0_i32_0 : i32, i32
  }
  func.func @transform_2(%arg0: i32) -> (i32, i32) {
    %c0_i32 = arith.constant 0 : i32
    %c0_i32_0 = arith.constant 0 : i32
    %c0_i32_1 = arith.constant 0 : i32
    return %c0_i32, %c0_i32_0 : i32, i32
  }
  func.func @transform_3(%arg0: i32) -> (i32, i32) {
    %c0_i32 = arith.constant 0 : i32
    %c0_i32_0 = arith.constant 0 : i32
    %c0_i32_1 = arith.constant 0 : i32
    return %c0_i32, %c0_i32_0 : i32, i32
  }
  func.func @transform_4(%arg0: i32) -> (i32, i32) {
    %c0_i32 = arith.constant 0 : i32
    %c0_i32_0 = arith.constant 0 : i32
    %c0_i32_1 = arith.constant 0 : i32
    return %c0_i32, %c0_i32_0 : i32, i32
  }
  func.func @transform_5(%arg0: i32) -> (i32, i32) {
    %c0_i32 = arith.constant 0 : i32
    %c0_i32_0 = arith.constant 0 : i32
    return %arg0, %c0_i32 : i32, i32
  }
}

</mosaic_0001>

<llo_original>
// kernel: tpu_custom_call.1
$region0: #{tpu_custom_call.1}
  #allocation0 [shape = 'u32[]', space=smem, size = 0x4, offset = 0x4, fixed_abs, tag = 'smem constant byte address 0x4 - core index']
  #allocation1 [shape = 'u32[144,128]{1,0:T(1,128)}', space=vmem, size = 0x12000, scoped, tag = 'internal scratch']
  #allocation2 [shape = 'f32[1,1]{1,0:T(1,128)S(6)}', space=smem, size = 0x200, scoped, tag = 'scoped memory for tpu_custom_call.1']
  %s0 = inlined_call_operand.vmem [shape: bf16[8,50], index: 0, kind: input, shape index: {}]
  %s1 = inlined_call_operand.vmem [shape: bf16[50,128], index: 1, kind: input, shape index: {}]
  %s2 = inlined_call_operand.vmem [shape: f32[1,128], index: 2, kind: input, shape index: {}]
  %s3 = inlined_call_operand.vmem [shape: bf16[128,1], index: 3, kind: input, shape index: {}]
  %s4 = inlined_call_operand.<no memory space> [shape: f32[1,1], index: 4, kind: input, shape index: {}]
  %s5 = inlined_call_operand.vmem [shape: f32[8,1], index: 5, kind: output, shape index: {}]
  %s6 = sld [smem:[#allocation0]]
  $region30: #{tpu_custom_call.1} parent=0
    _
  %s8 = ssub.s32 1, %s6
  %s9 = scalar_select 0, %s8, %s6
  %10 = sst [smem:[#allocation2]] %s4
  // Predicated region
  $region2: #{tpu_custom_call.1} parent=0 // pred_check
    _
  $region3: #{tpu_custom_call.1} parent=0 // pred_check_branch
    %12 = sbr.rel (0) target = $region5
  $region4: #{tpu_custom_call.1} parent=0 // pred_region
    _
  $region5: #{tpu_custom_call.1} parent=0 // pred_fallthru
    _
  // Predicated region
  $region6: #{tpu_custom_call.1} parent=0 // pred_check
    _
  $region7: #{tpu_custom_call.1} parent=0 // pred_check_branch
    %14 = sbr.rel (0) target = $region9
  $region8: #{tpu_custom_call.1} parent=0 // pred_region
    _
  $region9: #{tpu_custom_call.1} parent=0 // pred_fallthru
    _
  // Predicated region
  $region10: #{tpu_custom_call.1} parent=0 // pred_check
    _
  $region11: #{tpu_custom_call.1} parent=0 // pred_check_branch
    %16 = sbr.rel (0) target = $region13
  $region12: #{tpu_custom_call.1} parent=0 // pred_region
    _
  $region13: #{tpu_custom_call.1} parent=0 // pred_fallthru
    _
  // Predicated region
  $region14: #{tpu_custom_call.1} parent=0 // pred_check
    _
  $region15: #{tpu_custom_call.1} parent=0 // pred_check_branch
    %18 = sbr.rel (0) target = $region17
  $region16: #{tpu_custom_call.1} parent=0 // pred_region
    _
  $region17: #{tpu_custom_call.1} parent=0 // pred_fallthru
    _
  // Predicated region
  $region18: #{tpu_custom_call.1} parent=0 // pred_check
    _
  $region19: #{tpu_custom_call.1} parent=0 // pred_check_branch
    %20 = sbr.rel (0) target = $region21
  $region20: #{tpu_custom_call.1} parent=0 // pred_region
    _
  $region21: #{tpu_custom_call.1} parent=0 // pred_fallthru
    _
  %v22 = vld [vmem:[%s0] sm:$0xf]
  %v23 = vld [vmem:[%s1] sm:$0xf]
  %v24 = vld [vmem:[%s1 + $0x4] sm:$0xf]
  %v25 = vld [vmem:[%s1 + $0x8] sm:$0xf]
  %v26 = vld [vmem:[%s1 + $0xc] sm:$0xf]
  %v27 = vld [vmem:[%s1 + $0x10] sm:$0xf]
  %v28 = vld [vmem:[%s1 + $0x14] sm:$0xf]
  %v29 = vld [vmem:[%s1 + $0x18] sm:$0x1]
  %v30 = vld [vmem:[%s2] sm:$0x1]
  %v32 = vlaneseq
  %v33 = vshrl.u32 %v32, 7
  %v34 = vsub.s32 0, %v33
  %v35 = vrot.slane %v30, %v34
  %v44 = vunpack.c.l.b16 %v23
  %v45 = vunpack.c.l.b16 %v24
  %v46 = vunpack.c.l.b16 %v25
  %v47 = vunpack.c.l.b16 %v26
  %v48 = vunpack.c.l.b16 %v27
  %v49 = vunpack.c.l.b16 %v28
  %v50 = vunpack.c.l.b16 %v29
  %v51 = vpack.c.b16 %v45, %v44
  %v52 = vpack.c.b16 %v47, %v46
  %v53 = vpack.c.b16 %v49, %v48
  %v54 = vpack.c.b16 %v50, %v50
  %vm58 = vcmask 408576
  %v60 = vsel %vm58, %v22, 0
  %vm62 = vcmask 1040384
  %v64 = vsel %vm62, %v54, 0
  %66 = vmatprep.subr.bf16.mxu0 0
  %67 = vmatpush1.bf16.msra.mxu0 %v51
  %68 = vmatprep.subr.bf16.mxu0 0
  %69 = vmatpush1.bf16.msra.mxu0 %v52
  %70 = vmatprep.subr.bf16.mxu0 0
  %71 = vmatpush1.bf16.msra.mxu0 %v53
  %72 = vmatprep.subr.bf16.mxu0 0
  %73 = vmatpush1.bf16.msra.mxu0 %v64
  %74 = vmatprep.subr.bf16.mxu0 0
  %75 = vmatpush1.bf16.msra.mxu0 0
  %76 = vmatprep.subr.bf16.mxu0 0
  %77 = vmatpush1.bf16.msra.mxu0 0
  %78 = vmatprep.subr.bf16.mxu0 0
  %79 = vmatpush1.bf16.msra.mxu0 0
  %80 = vmatprep.subr.bf16.mxu0 0
  %81 = vmatpush1.bf16.msra.mxu0 0
  %82 = vmatprep.subr.bf16.mxu0 0
  %83 = vmatpush1.bf16.msra.mxu0 0
  %84 = vmatprep.subr.bf16.mxu0 0
  %85 = vmatpush1.bf16.msra.mxu0 0
  %86 = vmatprep.subr.bf16.mxu0 0
  %87 = vmatpush1.bf16.msra.mxu0 0
  %88 = vmatprep.subr.bf16.mxu0 0
  %89 = vmatpush1.bf16.msra.mxu0 0
  %90 = vmatprep.subr.bf16.mxu0 0
  %91 = vmatpush1.bf16.msra.mxu0 0
  %92 = vmatprep.subr.bf16.mxu0 0
  %93 = vmatpush1.bf16.msra.mxu0 0
  %94 = vmatprep.subr.bf16.mxu0 0
  %95 = vmatpush1.bf16.msra.mxu0 0
  %96 = vmatprep.subr.bf16.mxu0 0
  %97 = vmatpush1.bf16.msra.mxu0 0
  %98 = vmatprep.mubr.bf16.mxu0 0
  %99 = vmatmul.mubr.bf16.gmra.mrb[0].mxu0 %v60
  %v100 = vpop.f32.mrb[0].mxu0
  %v101 = vadd.f32 %v35, %v100
  %v102 = vpop.f32.mrb[0].mxu0
  %v103 = vpop.f32.mrb[0].mxu0
  %v104 = vpop.f32.mrb[0].mxu0
  %105 = vdwg.mxu0
  %v106 = vmax.f32 %v101, 0.0
  %v107 = vpack.c.bf16 %v106, %v106
  %v108 = vld [vmem:[%s3] sm:$0xf]
  %v109 = vld [vmem:[%s3 + $0x4] sm:$0xf]
  %v110 = vld [vmem:[%s3 + $0x8] sm:$0xf]
  %v111 = vld [vmem:[%s3 + $0xc] sm:$0xf]
  %v112 = vld [vmem:[%s3 + $0x10] sm:$0xf]
  %v113 = vld [vmem:[%s3 + $0x14] sm:$0xf]
  %v114 = vld [vmem:[%s3 + $0x18] sm:$0xf]
  %v115 = vld [vmem:[%s3 + $0x1c] sm:$0xf]
  %v116 = vld [vmem:[%s3 + $0x20] sm:$0xf]
  %v117 = vld [vmem:[%s3 + $0x24] sm:$0xf]
  %v118 = vld [vmem:[%s3 + $0x28] sm:$0xf]
  %v119 = vld [vmem:[%s3 + $0x2c] sm:$0xf]
  %v120 = vld [vmem:[%s3 + $0x30] sm:$0xf]
  %v121 = vld [vmem:[%s3 + $0x34] sm:$0xf]
  %v122 = vld [vmem:[%s3 + $0x38] sm:$0xf]
  %v123 = vld [vmem:[%s3 + $0x3c] sm:$0xf]
  %s124 = sld [smem:[#allocation2]]
  %v125 = vstv %s124
  %v142 = vunpack.c.l.b16 %v108
  %v143 = vunpack.c.l.b16 %v109
  %v144 = vunpack.c.l.b16 %v110
  %v145 = vunpack.c.l.b16 %v111
  %v146 = vunpack.c.l.b16 %v112
  %v147 = vunpack.c.l.b16 %v113
  %v148 = vunpack.c.l.b16 %v114
  %v149 = vunpack.c.l.b16 %v115
  %v150 = vunpack.c.l.b16 %v116
  %v151 = vunpack.c.l.b16 %v117
  %v152 = vunpack.c.l.b16 %v118
  %v153 = vunpack.c.l.b16 %v119
  %v154 = vunpack.c.l.b16 %v120
  %v155 = vunpack.c.l.b16 %v121
  %v156 = vunpack.c.l.b16 %v122
  %v157 = vunpack.c.l.b16 %v123
  %v158 = vpack.c.b16 %v143, %v142
  %v159 = vpack.c.b16 %v145, %v144
  %v160 = vpack.c.b16 %v147, %v146
  %v161 = vpack.c.b16 %v149, %v148
  %v162 = vpack.c.b16 %v151, %v150
  %v163 = vpack.c.b16 %v153, %v152
  %v164 = vpack.c.b16 %v155, %v154
  %v165 = vpack.c.b16 %v157, %v156
  %174 = vmatprep.subr.bf16.mxu0 0
  %175 = vmatpush1.bf16.msra.mxu0 %v158
  %176 = vmatprep.subr.bf16.mxu0 0
  %177 = vmatpush1.bf16.msra.mxu0 %v159
  %178 = vmatprep.subr.bf16.mxu0 0
  %179 = vmatpush1.bf16.msra.mxu0 %v160
  %180 = vmatprep.subr.bf16.mxu0 0
  %181 = vmatpush1.bf16.msra.mxu0 %v161
  %182 = vmatprep.subr.bf16.mxu0 0
  %183 = vmatpush1.bf16.msra.mxu0 %v162
  %184 = vmatprep.subr.bf16.mxu0 0
  %185 = vmatpush1.bf16.msra.mxu0 %v163
  %186 = vmatprep.subr.bf16.mxu0 0
  %187 = vmatpush1.bf16.msra.mxu0 %v164
  %188 = vmatprep.subr.bf16.mxu0 0
  %189 = vmatpush1.bf16.msra.mxu0 %v165
  %190 = vmatprep.subr.bf16.mxu0 0
  %191 = vmatpush1.bf16.msra.mxu0 0
  %192 = vmatprep.subr.bf16.mxu0 0
  %193 = vmatpush1.bf16.msra.mxu0 0
  %194 = vmatprep.subr.bf16.mxu0 0
  %195 = vmatpush1.bf16.msra.mxu0 0
  %196 = vmatprep.subr.bf16.mxu0 0
  %197 = vmatpush1.bf16.msra.mxu0 0
  %198 = vmatprep.subr.bf16.mxu0 0
  %199 = vmatpush1.bf16.msra.mxu0 0
  %200 = vmatprep.subr.bf16.mxu0 0
  %201 = vmatpush1.bf16.msra.mxu0 0
  %202 = vmatprep.subr.bf16.mxu0 0
  %203 = vmatpush1.bf16.msra.mxu0 0
  %204 = vmatprep.subr.bf16.mxu0 0
  %205 = vmatpush1.bf16.msra.mxu0 0
  %206 = vmatprep.mubr.bf16.mxu0 0
  %207 = vmatmul.mubr.bf16.gmra.mrb[0].mxu0 %v107
  %v208 = vpop.f32.mrb[0].mxu0
  %v209 = vadd.f32 %v125, %v208
  %v210 = vpop.f32.mrb[0].mxu0
  %v211 = vpop.f32.mrb[0].mxu0
  %v212 = vpop.f32.mrb[0].mxu0
  %213 = vdwg.mxu0
  %v214 = vmul.f32 %v209, 0.5
  %v215 = vtanh.pop %v214
  %v216 = vmul.f32 %v215, 0.5
  %v217 = vadd.f32 %v216, 0.5
  %vm218 = vcmask 7168
  %219 = vst.msk [vmem:[%s5] sm:$0xff] %vm218, %v217
  // Predicated region
  $region22: #{tpu_custom_call.1} parent=0 // pred_check
    _
  $region23: #{tpu_custom_call.1} parent=0 // pred_check_branch
    %221 = sbr.rel (0) target = $region25
  $region24: #{tpu_custom_call.1} parent=0 // pred_region
    _
  $region25: #{tpu_custom_call.1} parent=0 // pred_fallthru
    _
  // Predicated region
  $region26: #{tpu_custom_call.1} parent=0 // pred_check
    _
  $region27: #{tpu_custom_call.1} parent=0 // pred_check_branch
    %223 = sbr.rel (0) target = $region29
  $region28: #{tpu_custom_call.1} parent=0 // pred_region
    _
  $region29: #{tpu_custom_call.1} parent=0 // pred_fallthru
    _

</llo_original>
